<compile_context>
chip_gen: v6e
topology: v6e:2x2x1
jax: 0.10.0
libtpu: 0.0.40
codegen_flags: <defaults>
</compile_context>

<pallas_src>
import functools

import jax
import jax.numpy as jnp
import numpy as np
from jax.experimental import pallas as pl
from jax.experimental.pallas import tpu as pltpu


# ----------------------------------------------------------------------------------
# Kernel 1: dual sub-pixel 3x3 conv (main + identity branch in one matmul),
#           LeakyReLU fused on the main-branch channels, halo built in VMEM.
# ----------------------------------------------------------------------------------
def _dual_subpel_kernel(x_ref, w_ref, b_ref, o_ref, pad_ref, *,
                        tile_h, H, W, Cin, C_main, neg_slope):
    t = pl.program_id(1)
    nt = pl.num_programs(1)
    r0 = pl.multiple_of(t * tile_h, tile_h)

    # ---- halo tile in VMEM (zero border == conv padding), no HBM padded copy ----
    pad_ref[...] = jnp.zeros_like(pad_ref)
    pad_ref[1:tile_h + 1, 1:W + 1, :] = x_ref[0, pl.ds(r0, tile_h), :, :]

    @pl.when(t > 0)
    def _():
        top = jnp.maximum(r0 - 1, 0)
        pad_ref[0:1, 1:W + 1, :] = x_ref[0, pl.ds(top, 1), :, :]

    @pl.when(t < nt - 1)
    def _():
        bot = jnp.minimum(r0 + tile_h, H - 1)
        pad_ref[tile_h + 1:tile_h + 2, 1:W + 1, :] = x_ref[0, pl.ds(bot, 1), :, :]

    # ---- im2col: 9 shifted views -> one MXU matmul with K = 9*Cin ----
    taps = [pad_ref[dy:dy + tile_h, dx:dx + W, :]
            for dy in range(3) for dx in range(3)]
    patches = jnp.concatenate(taps, axis=-1)                      # (tile_h, W, 9*Cin)
    patches = patches.reshape(tile_h * W, 9 * Cin).astype(jnp.float32)

    y = jnp.dot(patches, w_ref[...], preferred_element_type=jnp.float32)
    y = y + b_ref[...]                                            # (tile_h*W, 2*C_main)

    # LeakyReLU only on the main-branch half; identity half passes through.
    lane = jax.lax.broadcasted_iota(jnp.int32, y.shape, 1)
    y = jnp.where((lane < C_main) & (y < 0), neg_slope * y, y)

    o_ref[...] = y.reshape(1, tile_h, W, y.shape[-1]).astype(o_ref.dtype)


def dual_subpel_conv3x3(x, w_main, b_main, w_up, b_up, *, neg_slope=0.01, tile_h=8):
    """Both sub-pixel convs of the block in one pass.

    x : (N, H, W, Cin)   w_* : (3, 3, Cin, out_ch*r*r)   b_* : (out_ch*r*r,)
    Returns (N, H, W, 2*out_ch*r*r): [:C_main] = LeakyReLU(subpel main), [C_main:] = identity branch.
    """
    N, H, W, Cin = x.shape
    C_main = w_main.shape[-1]
    C_tot = 2 * C_main
    th = tile_h if H % tile_h == 0 else H
    nt = H // th

    w_cat = jnp.concatenate([w_main.reshape(9 * Cin, C_main),
                             w_up.reshape(9 * Cin, C_main)], axis=1)   # (9*Cin, 2*C_main)
    b_cat = jnp.concatenate([b_main, b_up]).reshape(1, C_tot)

    kernel = functools.partial(_dual_subpel_kernel, tile_h=th, H=H, W=W,
                               Cin=Cin, C_main=C_main, neg_slope=neg_slope)

    return pl.pallas_call(
        kernel,
        out_shape=jax.ShapeDtypeStruct((N, H, W, C_tot), x.dtype),
        grid=(N, nt),
        in_specs=[
            # full image per batch stays resident across the (inner) row-tile axis
            # TODO(synk): for production-size images, row-tile this input too via
            # manual halo DMA (memory_space=pl.ANY) to fit v7x's 64 MiB VMEM.
            pl.BlockSpec((1, H, W, Cin), lambda n, t: (n, 0, 0, 0)),
            pl.BlockSpec((9 * Cin, C_tot), lambda n, t: (0, 0)),
            pl.BlockSpec((1, C_tot), lambda n, t: (0, 0)),
        ],
        out_specs=pl.BlockSpec((1, th, W, C_tot), lambda n, t: (n, t, 0, 0)),
        scratch_shapes=[pltpu.VMEM((th + 2, W + 2, Cin), x.dtype)],
        compiler_params=pltpu.CompilerParams(
            dimension_semantics=("parallel", "parallel")),
    )(x, w_cat, b_cat)


# ----------------------------------------------------------------------------------
# Kernel 2: conv3x3 (im2col single matmul) + inverse GDN + residual add, fused.
# Input carries both shuffled branches in its channel dim: [:C]=main, [C:]=identity.
# ----------------------------------------------------------------------------------
def _conv_igdn_add_kernel(y_ref, w_ref, b_ref, g_ref, beta_ref, o_ref, pad_ref, *,
                          tile_h, H, W, C):
    t = pl.program_id(1)
    nt = pl.num_programs(1)
    r0 = pl.multiple_of(t * tile_h, tile_h)

    # halo tile of the main branch (channels [0:C])
    pad_ref[...] = jnp.zeros_like(pad_ref)
    pad_ref[1:tile_h + 1, 1:W + 1, :] = y_ref[0, pl.ds(r0, tile_h), :, 0:C]

    @pl.when(t > 0)
    def _():
        top = jnp.maximum(r0 - 1, 0)
        pad_ref[0:1, 1:W + 1, :] = y_ref[0, pl.ds(top, 1), :, 0:C]

    @pl.when(t < nt - 1)
    def _():
        bot = jnp.minimum(r0 + tile_h, H - 1)
        pad_ref[tile_h + 1:tile_h + 2, 1:W + 1, :] = y_ref[0, pl.ds(bot, 1), :, 0:C]

    # im2col -> single matmul (K = 9*C)
    taps = [pad_ref[dy:dy + tile_h, dx:dx + W, :]
            for dy in range(3) for dx in range(3)]
    patches = jnp.concatenate(taps, axis=-1)                      # (tile_h, W, 9*C)
    patches = patches.reshape(tile_h * W, 9 * C).astype(jnp.float32)

    y = jnp.dot(patches, w_ref[...], preferred_element_type=jnp.float32) + b_ref[...]

    # inverse GDN: y * sqrt(y^2 @ gamma + beta)
    norm = jnp.dot(y * y, g_ref[...], preferred_element_type=jnp.float32) + beta_ref[...]
    out = y * jnp.sqrt(norm)

    # residual add with the (already shuffled) identity branch, channels [C:2C]
    ident = y_ref[0, pl.ds(r0, tile_h), :, C:2 * C].astype(jnp.float32)
    out = out + ident.reshape(tile_h * W, C)

    o_ref[...] = out.reshape(1, tile_h, W, C).astype(o_ref.dtype)


def conv3x3_igdn_add(ysh, w, b, gamma, beta, *, tile_h=8):
    """ysh : (N, H, W, 2*C) — [:C]=main branch, [C:]=identity.  Returns (N, H, W, C)."""
    N, H, W, C2 = ysh.shape
    C = C2 // 2
    th = tile_h if H % tile_h == 0 else H
    nt = H // th

    w_mat = w.reshape(9 * C, C)
    b2 = b.reshape(1, C)
    beta2 = beta.reshape(1, C)

    kernel = functools.partial(_conv_igdn_add_kernel, tile_h=th, H=H, W=W, C=C)

    return pl.pallas_call(
        kernel,
        out_shape=jax.ShapeDtypeStruct((N, H, W, C), ysh.dtype),
        grid=(N, nt),
        in_specs=[
            pl.BlockSpec((1, H, W, C2), lambda n, t: (n, 0, 0, 0)),
            pl.BlockSpec((9 * C, C), lambda n, t: (0, 0)),
            pl.BlockSpec((1, C), lambda n, t: (0, 0)),
            pl.BlockSpec((C, C), lambda n, t: (0, 0)),
            pl.BlockSpec((1, C), lambda n, t: (0, 0)),
        ],
        out_specs=pl.BlockSpec((1, th, W, C), lambda n, t: (n, t, 0, 0)),
        scratch_shapes=[pltpu.VMEM((th + 2, W + 2, C), ysh.dtype)],
        compiler_params=pltpu.CompilerParams(
            dimension_semantics=("parallel", "parallel")),
    )(ysh, w_mat, b2, gamma, beta2)


# ----------------------------------------------------------------------------------
# Glue (pure data rearrangement / parameter setup)
# ----------------------------------------------------------------------------------
def pixel_shuffle_nhwc(x, r):
    """NHWC PixelShuffle matching torch.nn.PixelShuffle channel ordering.

    Applied ONCE to the concatenated [main | identity] tensor: because channels are
    grouped channel-major (c*r*r + i*r + j) in each half, shuffling with C=2*out_ch
    shuffles both branches at the same time.
    """
    # TODO(synk): this single reshape/transpose stays in XLA (one HBM pass); folding
    # it into the Pallas kernels requires per-phase strided stores.
    N, H, W, Cr2 = x.shape
    C = Cr2 // (r * r)
    x = x.reshape(N, H, W, C, r, r)
    x = x.transpose(0, 1, 4, 2, 5, 3)                         # N, H, r, W, r, C
    return x.reshape(N, H * r, W * r, C)


def init_params(key, in_ch, out_ch, r):
    ks = jax.random.split(key, 6)

    def conv_w(k, cin, cout):
        return 0.1 * jax.random.normal(k, (3, 3, cin, cout), jnp.float32)

    return dict(
        subpel_w=conv_w(ks[0], in_ch, out_ch * r * r),
        subpel_b=0.01 * jax.random.normal(ks[1], (out_ch * r * r,), jnp.float32),
        conv_w=conv_w(ks[2], out_ch, out_ch),
        conv_b=0.01 * jax.random.normal(ks[3], (out_ch,), jnp.float32),
        # IGDN params (synthetic, deterministic; nonnegative so sqrt is well-defined,
        # matching GDN's nonnegative reparametrization)
        gamma=(0.1 * jnp.eye(out_ch, dtype=jnp.float32)
               + 0.01 * jnp.abs(jax.random.normal(ks[4], (out_ch, out_ch), jnp.float32))),
        beta=jnp.ones((out_ch,), jnp.float32),
        up_w=conv_w(ks[5], in_ch, out_ch * r * r),
        up_b=jnp.zeros((out_ch * r * r,), jnp.float32),
    )


def residual_block_upsample(x_nhwc, p, r=2):
    # kernel 1: both subpel convs share one im2col matmul; LeakyReLU fused on main half
    z = dual_subpel_conv3x3(x_nhwc, p['subpel_w'], p['subpel_b'],
                            p['up_w'], p['up_b'], neg_slope=0.01)
    # single pixel shuffle for both branches (XLA glue, pure permutation)
    ysh = pixel_shuffle_nhwc(z, r)
    # kernel 2: conv3x3 + inverse GDN + residual add, fused
    return conv3x3_igdn_add(ysh, p['conv_w'], p['conv_b'], p['gamma'], p['beta'])


# ----------------------------------------------------------------------------------
# Pure-JAX reference (for correctness check only)
# ----------------------------------------------------------------------------------
def ref_forward(x, p, r=2):
    def conv(x, w, b):
        y = jax.lax.conv_general_dilated(x, w, (1, 1), ((1, 1), (1, 1)),
                                         dimension_numbers=('NHWC', 'HWIO', 'NHWC'))
        return y + b

    out = conv(x, p['subpel_w'], p['subpel_b'])
    out = pixel_shuffle_nhwc(out, r)
    out = jnp.where(out >= 0, out, 0.01 * out)                # LeakyReLU after shuffle
    out = conv(out, p['conv_w'], p['conv_b'])
    norm = jnp.sqrt(jnp.einsum('nhwc,cd->nhwd', out * out, p['gamma']) + p['beta'])
    out = out * norm                                          # inverse GDN
    identity = pixel_shuffle_nhwc(conv(x, p['up_w'], p['up_b']), r)
    return out + identity


# ----------------------------------------------------------------------------------
if __name__ == "__main__":
    N, in_ch, out_ch, H, W, r = 2, 4, 4, 16, 16, 2

    key = jax.random.PRNGKey(0)
    k_x, k_p = jax.random.split(key)

    x_nchw = jax.random.normal(k_x, (N, in_ch, H, W), jnp.float32)   # PyTorch-style input
    x_nhwc = jnp.transpose(x_nchw, (0, 2, 3, 1))                     # layout: NHWC for kernels
    params = init_params(k_p, in_ch, out_ch, r)

    out = residual_block_upsample(x_nhwc, params, r)
    out = jax.block_until_ready(out)

    assert out.shape == (N, H * r, W * r, out_ch), out.shape

    ref = ref_forward(x_nhwc, params, r)
    np.testing.assert_allclose(np.asarray(out), np.asarray(ref), rtol=2e-4, atol=2e-4)

    print("KERNEL_OK")
</pallas_src>

<mosaic_0001>
module attributes {stable_mosaic.version = 11 : i64} {
  func.func @_dual_subpel_kernel(%arg0: i32, %arg1: i32, %arg2: memref<1x16x16x4xf32, #tpu.memory_space<vmem>>, %arg3: memref<36x32xf32, #tpu.memory_space<vmem>>, %arg4: memref<1x32xf32, #tpu.memory_space<vmem>>, %arg5: memref<1x8x16x32xf32, #tpu.memory_space<vmem>>, %arg6: memref<10x18x4xf32, #tpu.memory_space<vmem>>) attributes {dimension_semantics = [#tpu.dimension_semantics<parallel>, #tpu.dimension_semantics<parallel>], iteration_bounds = array<i64: 2, 2>, scalar_prefetch = 0 : i64, scratch_operands = 1 : i64, tpu.core_type = #tpu.core_type<tc>, window_params = [{transform_indices = @transform_0, window_bounds = array<i64: 1, 16, 16, 4>}, {pipeline_mode = #tpu.pipeline_mode<synchronous>, transform_indices = @transform_1, window_bounds = array<i64: 36, 32>}, {pipeline_mode = #tpu.pipeline_mode<synchronous>, transform_indices = @transform_2, window_bounds = array<i64: 1, 32>}, {transform_indices = @transform_3, window_bounds = array<i64: 1, 8, 16, 32>}]} {
    %c8_i32 = arith.constant 8 : i32
    %0 = arith.muli %arg1, %c8_i32 : i32
    %1 = tpu.assume_multiple %0, 8 : i32
    %cst = arith.constant 0.000000e+00 : f32
    %2 = vector.broadcast %cst : f32 to vector<10x18x4xf32>
    %c0 = arith.constant 0 : index
    %c0_0 = arith.constant 0 : index
    %c0_1 = arith.constant 0 : index
    %3 = vector.load %arg6[%c0, %c0_0, %c0_1] : memref<10x18x4xf32, #tpu.memory_space<vmem>>, vector<10x18x4xf32>
    tpu.vector_store %arg6[%c0, %c0_0, %c0_1], %2 {strides = array<i32>} : memref<10x18x4xf32, #tpu.memory_space<vmem>>, vector<10x18x4xf32>,
    %c0_2 = arith.constant 0 : index
    %4 = arith.index_cast %1 : i32 to index
    %c0_3 = arith.constant 0 : index
    %c0_4 = arith.constant 0 : index
    %5 = vector.load %arg2[%c0_2, %4, %c0_3, %c0_4] : memref<1x16x16x4xf32, #tpu.memory_space<vmem>>, vector<1x8x16x4xf32>
    %6 = vector.shape_cast %5 : vector<1x8x16x4xf32> to vector<8x16x4xf32>
    %c1 = arith.constant 1 : index
    %c1_5 = arith.constant 1 : index
    %c0_6 = arith.constant 0 : index
    %7 = vector.load %arg6[%c1, %c1_5, %c0_6] : memref<10x18x4xf32, #tpu.memory_space<vmem>>, vector<8x16x4xf32>
    tpu.vector_store %arg6[%c1, %c1_5, %c0_6], %6 {strides = array<i32>} : memref<10x18x4xf32, #tpu.memory_space<vmem>>, vector<8x16x4xf32>,
    %c0_i32 = arith.constant 0 : i32
    %8 = arith.cmpi sgt, %arg1, %c0_i32 : i32
    %9 = arith.extui %8 : i1 to i32
    %c0_i32_7 = arith.constant 0 : i32
    %10 = arith.cmpi ne, %9, %c0_i32_7 : i32
    scf.if %10 {
      %c1_i32_46 = arith.constant 1 : i32
      %41 = arith.subi %1, %c1_i32_46 : i32
      %c0_i32_47 = arith.constant 0 : i32
      %42 = arith.maxsi %41, %c0_i32_47 : i32
      %c0_48 = arith.constant 0 : index
      %43 = arith.index_cast %42 : i32 to index
      %c0_49 = arith.constant 0 : index
      %c0_50 = arith.constant 0 : index
      %44 = vector.load %arg2[%c0_48, %43, %c0_49, %c0_50] : memref<1x16x16x4xf32, #tpu.memory_space<vmem>>, vector<1x1x16x4xf32>
      %45 = vector.shape_cast %44 : vector<1x1x16x4xf32> to vector<1x16x4xf32>
      %c0_51 = arith.constant 0 : index
      %c1_52 = arith.constant 1 : index
      %c0_53 = arith.constant 0 : index
      %46 = vector.load %arg6[%c0_51, %c1_52, %c0_53] : memref<10x18x4xf32, #tpu.memory_space<vmem>>, vector<1x16x4xf32>
      tpu.vector_store %arg6[%c0_51, %c1_52, %c0_53], %45 {strides = array<i32>} : memref<10x18x4xf32, #tpu.memory_space<vmem>>, vector<1x16x4xf32>,
    } else {
    }
    %c1_i32 = arith.constant 1 : i32
    %11 = arith.cmpi slt, %arg1, %c1_i32 : i32
    %12 = arith.extui %11 : i1 to i32
    %c0_i32_8 = arith.constant 0 : i32
    %13 = arith.cmpi ne, %12, %c0_i32_8 : i32
    scf.if %13 {
      %c8_i32_46 = arith.constant 8 : i32
      %41 = arith.addi %1, %c8_i32_46 : i32
      %c15_i32 = arith.constant 15 : i32
      %42 = arith.minsi %41, %c15_i32 : i32
      %c0_47 = arith.constant 0 : index
      %43 = arith.index_cast %42 : i32 to index
      %c0_48 = arith.constant 0 : index
      %c0_49 = arith.constant 0 : index
      %44 = vector.load %arg2[%c0_47, %43, %c0_48, %c0_49] : memref<1x16x16x4xf32, #tpu.memory_space<vmem>>, vector<1x1x16x4xf32>
      %45 = vector.shape_cast %44 : vector<1x1x16x4xf32> to vector<1x16x4xf32>
      %c9 = arith.constant 9 : index
      %c1_50 = arith.constant 1 : index
      %c0_51 = arith.constant 0 : index
      %46 = vector.load %arg6[%c9, %c1_50, %c0_51] : memref<10x18x4xf32, #tpu.memory_space<vmem>>, vector<1x16x4xf32>
      tpu.vector_store %arg6[%c9, %c1_50, %c0_51], %45 {strides = array<i32>} : memref<10x18x4xf32, #tpu.memory_space<vmem>>, vector<1x16x4xf32>,
    } else {
    }
    %c0_9 = arith.constant 0 : index
    %c0_10 = arith.constant 0 : index
    %c0_11 = arith.constant 0 : index
    %14 = vector.load %arg6[%c0_9, %c0_10, %c0_11] : memref<10x18x4xf32, #tpu.memory_space<vmem>>, vector<8x16x4xf32>
    %c0_12 = arith.constant 0 : index
    %c1_13 = arith.constant 1 : index
    %c0_14 = arith.constant 0 : index
    %15 = vector.load %arg6[%c0_12, %c1_13, %c0_14] : memref<10x18x4xf32, #tpu.memory_space<vmem>>, vector<8x16x4xf32>
    %c0_15 = arith.constant 0 : index
    %c2 = arith.constant 2 : index
    %c0_16 = arith.constant 0 : index
    %16 = vector.load %arg6[%c0_15, %c2, %c0_16] : memref<10x18x4xf32, #tpu.memory_space<vmem>>, vector<8x16x4xf32>
    %c1_17 = arith.constant 1 : index
    %c0_18 = arith.constant 0 : index
    %c0_19 = arith.constant 0 : index
    %17 = vector.load %arg6[%c1_17, %c0_18, %c0_19] : memref<10x18x4xf32, #tpu.memory_space<vmem>>, vector<8x16x4xf32>
    %c1_20 = arith.constant 1 : index
    %c1_21 = arith.constant 1 : index
    %c0_22 = arith.constant 0 : index
    %18 = vector.load %arg6[%c1_20, %c1_21, %c0_22] : memref<10x18x4xf32, #tpu.memory_space<vmem>>, vector<8x16x4xf32>
    %c1_23 = arith.constant 1 : index
    %c2_24 = arith.constant 2 : index
    %c0_25 = arith.constant 0 : index
    %19 = vector.load %arg6[%c1_23, %c2_24, %c0_25] : memref<10x18x4xf32, #tpu.memory_space<vmem>>, vector<8x16x4xf32>
    %c2_26 = arith.constant 2 : index
    %c0_27 = arith.constant 0 : index
    %c0_28 = arith.constant 0 : index
    %20 = vector.load %arg6[%c2_26, %c0_27, %c0_28] : memref<10x18x4xf32, #tpu.memory_space<vmem>>, vector<8x16x4xf32>
    %c2_29 = arith.constant 2 : index
    %c1_30 = arith.constant 1 : index
    %c0_31 = arith.constant 0 : index
    %21 = vector.load %arg6[%c2_29, %c1_30, %c0_31] : memref<10x18x4xf32, #tpu.memory_space<vmem>>, vector<8x16x4xf32>
    %c2_32 = arith.constant 2 : index
    %c2_33 = arith.constant 2 : index
    %c0_34 = arith.constant 0 : index
    %22 = vector.load %arg6[%c2_32, %c2_33, %c0_34] : memref<10x18x4xf32, #tpu.memory_space<vmem>>, vector<8x16x4xf32>
    %23 = tpu.concatenate %14, %15, %16, %17, %18, %19, %20, %21, %22 in 2 : vector<8x16x4xf32>, vector<8x16x4xf32>, vector<8x16x4xf32>, vector<8x16x4xf32>, vector<8x16x4xf32>, vector<8x16x4xf32>, vector<8x16x4xf32>, vector<8x16x4xf32>, vector<8x16x4xf32> -> vector<8x16x36xf32>
    %24 = vector.shape_cast %23 : vector<8x16x36xf32> to vector<128x36xf32>
    %c0_35 = arith.constant 0 : index
    %c0_36 = arith.constant 0 : index
    %25 = vector.load %arg3[%c0_35, %c0_36] : memref<36x32xf32, #tpu.memory_space<vmem>>, vector<36x32xf32>
    %cst_37 = arith.constant dense<0.000000e+00> : vector<128x32xf32>
    %26 = tpu.matmul %24, %25, %cst_37 {dimension_numbers = #tpu.dot_dimension_numbers<[1], [0], [0], [1], [0, 0, 1, 1], [], []>} : vector<128x36xf32>, vector<36x32xf32>, vector<128x32xf32> -> vector<128x32xf32>
    %c0_38 = arith.constant 0 : index
    %c0_39 = arith.constant 0 : index
    %27 = vector.load %arg4[%c0_38, %c0_39] : memref<1x32xf32, #tpu.memory_space<vmem>>, vector<1x32xf32>
    %28 = vector.broadcast %27 : vector<1x32xf32> to vector<128x32xf32>
    %29 = arith.addf %26, %28 : vector<128x32xf32>
    %30 = tpu.iota {dimensions = array<i32: 1>} : vector<128x32xi32>
    %c16_i32 = arith.constant 16 : i32
    %31 = vector.broadcast %c16_i32 : i32 to vector<128x32xi32>
    %32 = arith.cmpi slt, %30, %31 : vector<128x32xi32>
    %cst_40 = arith.constant 0.000000e+00 : f32
    %33 = vector.broadcast %cst_40 : f32 to vector<128x32xf32>
    %34 = arith.cmpf olt, %29, %33 : vector<128x32xf32>
    %35 = arith.andi %32, %34 : vector<128x32xi1>
    %cst_41 = arith.constant 0.00999999977 : f32
    %36 = vector.broadcast %cst_41 : f32 to vector<128x32xf32>
    %37 = arith.mulf %36, %29 : vector<128x32xf32>
    %38 = arith.select %35, %37, %29 : vector<128x32xi1>, vector<128x32xf32>
    %39 = vector.shape_cast %38 : vector<128x32xf32> to vector<1x8x16x32xf32>
    %c0_42 = arith.constant 0 : index
    %c0_43 = arith.constant 0 : index
    %c0_44 = arith.constant 0 : index
    %c0_45 = arith.constant 0 : index
    %40 = vector.load %arg5[%c0_42, %c0_43, %c0_44, %c0_45] : memref<1x8x16x32xf32, #tpu.memory_space<vmem>>, vector<1x8x16x32xf32>
    tpu.vector_store %arg5[%c0_42, %c0_43, %c0_44, %c0_45], %39 {strides = array<i32>} : memref<1x8x16x32xf32, #tpu.memory_space<vmem>>, vector<1x8x16x32xf32>,
    return
  }
  func.func @transform_0(%arg0: i32, %arg1: i32) -> (i32, i32, i32, i32) {
    %c0_i32 = arith.constant 0 : i32
    %c0_i32_0 = arith.constant 0 : i32
    %c0_i32_1 = arith.constant 0 : i32
    %c0_i32_2 = arith.constant 0 : i32
    return %arg0, %c0_i32, %c0_i32_0, %c0_i32_1 : i32, i32, i32, i32
  }
  func.func @transform_1(%arg0: i32, %arg1: i32) -> (i32, i32) {
    %c0_i32 = arith.constant 0 : i32
    %c0_i32_0 = arith.constant 0 : i32
    %c0_i32_1 = arith.constant 0 : i32
    return %c0_i32, %c0_i32_0 : i32, i32
  }
  func.func @transform_2(%arg0: i32, %arg1: i32) -> (i32, i32) {
    %c0_i32 = arith.constant 0 : i32
    %c0_i32_0 = arith.constant 0 : i32
    %c0_i32_1 = arith.constant 0 : i32
    return %c0_i32, %c0_i32_0 : i32, i32
  }
  func.func @transform_3(%arg0: i32, %arg1: i32) -> (i32, i32, i32, i32) {
    %c0_i32 = arith.constant 0 : i32
    %c0_i32_0 = arith.constant 0 : i32
    %c0_i32_1 = arith.constant 0 : i32
    return %arg0, %arg1, %c0_i32, %c0_i32_0 : i32, i32, i32, i32
  }
}

</mosaic_0001>

<llo_original>
// kernel: tpu_custom_call.1
$region0: #{tpu_custom_call.1}
  #allocation0 [shape = 'u32[]', space=smem, size = 0x4, offset = 0x4, fixed_abs, tag = 'smem constant byte address 0x4 - core index']
  #allocation1 [shape = 'u32[144,128]{1,0:T(1,128)}', space=vmem, size = 0x12000, scoped, tag = 'internal scratch']
  #allocation2 [shape = 'f32[10,18,4]{2,1,0:T(8,128)}', space=vmem, size = 0x1e000, scoped, tag = 'scratch operand']
  %s0 = inlined_call_operand.vmem [shape: f32[2,16,16,4], index: 0, kind: input, shape index: {}]
  %s1 = inlined_call_operand.vmem [shape: f32[36,32], index: 1, kind: input, shape index: {}]
  %s2 = inlined_call_operand.vmem [shape: f32[1,32], index: 2, kind: input, shape index: {}]
  %s3 = inlined_call_operand.hbm [shape: f32[2,16,16,32], index: 3, kind: output, shape index: {}]
  %s4 = sld [smem:[#allocation0]]
  $region53: #{tpu_custom_call.1} parent=0
    _
  %s6 = ssub.s32 1, %s4
  %s7 = scalar_select 0, %s6, %s4
  $region1: #{tpu_custom_call.1} parent=0
    #allocation3 [shape = 'u8[131072]{0}', space=vmem, size = 0x20000, scoped, tag = 'output window, operand 0']
    #allocation4 [shape = 's32[2]{0}', space=sflag, size = 0x8, scoped, tag = 'scoped memory for tpu_custom_call.1']
    %8 = vsyncpa [#allocation4], 0
    %s9 = scalar_lea.sflag [#allocation4], 1
    %10 = vsyncpa %s9, 0
    loop: start=0, step=1, limit=6
    $region2: #{tpu_custom_call.1} parent=1 // loop_pre_header
      _
    $region3: #{tpu_custom_call.1} parent=1 // loop_header
      %s12 = sphi 0, %s16
      %p13 = scmp.ge.s32.totalorder %s12, 6
      %s19 = sphi 0, %s31
      %s20 = sphi 0, %s27
      %s21 = sphi 0, %s19
      %s22 = sphi 0, %s20
      %s23 = sphi 0, %s21
      %s24 = sphi 0, %s22
      %s34 = sphi 0, %s36
      %s37 = sphi 0, %s34
      %s38 = sphi 0, %s37
      %s54 = sphi 0, %s38
      %s58 = sphi 0, %s58
      %s60 = sphi 0, %s58
      %s61 = sphi 0, %s60
      %s75 = sphi 0, %s61
      %s79 = sphi 0, %s79
      %s81 = sphi 0, %s79
      %s82 = sphi 0, %s81
      %s96 = sphi 0, %s82
      %s104 = sphi 0, %s106
      %s107 = sphi 0, %s104
      %s108 = sphi 0, %s107
      %s124 = sphi 0, %s108
    $region4: #{tpu_custom_call.1} parent=1 // loop_header_branch
      %15 = sbr.rel (%p13) target = $region8
    $region5: #{tpu_custom_call.1} parent=1 // loop_body
      %s17 = ssub.s32 %s12, 1
      %s18 = ssub.s32 %s12, 2
      %s25 = sadd.s32 1, %s20
      %p26 = scmp.ge.s32.totalorder %s25, 2
      %s27 = scalar_select %p26, 0, %s25
      %s28 = sadd.s32 1, %s19
      %s29 = scalar_select %p26, %s28, %s19
      %p30 = scmp.ge.s32.totalorder %s29, 2
      %s31 = scalar_select %p30, 0, %s29
      %s32 = ssub.s32 %s19, %s31
      %p33 = scmp.eq.s32.totalorder %s32, 0
      %s35 = sadd.s32 %s34, 1
      %s36 = scalar_select %p33, %s34, %s35
      %p39 = pneg %p33
      %p40 = scmp.eq.s32.totalorder %s12, 3
      %p41 = por %p39, %p40
      %p42 = scmp.ne.s32.totalorder %s34, %s37
      %p43 = scmp.eq.s32.totalorder %s12, 0
      %p44 = por %p42, %p43
      %p45 = scmp.ne.s32.totalorder %s34, %s37
      %p46 = scmp.eq.s32.totalorder %s17, 3
      %p47 = por %p45, %p46
      %p48 = scmp.ne.s32.totalorder %s37, %s38
      %p49 = scmp.eq.s32.totalorder %s17, 0
      %p50 = por %p48, %p49
      %p51 = scmp.ne.s32.totalorder %s37, %s38
      %p52 = scmp.eq.s32.totalorder %s18, 3
      %p53 = por %p51, %p52
      %p55 = scmp.ne.s32.totalorder %s38, %s54
      %p56 = scmp.eq.s32.totalorder %s18, 0
      %p57 = por %p55, %p56
      %s59 = sadd.s32 %s58, 1
      %p62 = scmp.eq.s32.totalorder %s12, 3
      %p63 = scmp.ne.s32.totalorder %s58, %s60
      %p64 = scmp.eq.s32.totalorder %s12, 0
      %p65 = por %p63, %p64
      %p66 = scmp.ne.s32.totalorder %s58, %s60
      %p67 = scmp.eq.s32.totalorder %s17, 3
      %p68 = por %p66, %p67
      %p69 = scmp.ne.s32.totalorder %s60, %s61
      %p70 = scmp.eq.s32.totalorder %s17, 0
      %p71 = por %p69, %p70
      %p72 = scmp.ne.s32.totalorder %s60, %s61
      %p73 = scmp.eq.s32.totalorder %s18, 3
      %p74 = por %p72, %p73
      %p76 = scmp.ne.s32.totalorder %s61, %s75
      %p77 = scmp.eq.s32.totalorder %s18, 0
      %p78 = por %p76, %p77
      %s80 = sadd.s32 %s79, 1
      %p83 = scmp.eq.s32.totalorder %s12, 3
      %p84 = scmp.ne.s32.totalorder %s79, %s81
      %p85 = scmp.eq.s32.totalorder %s12, 0
      %p86 = por %p84, %p85
      %p87 = scmp.ne.s32.totalorder %s79, %s81
      %p88 = scmp.eq.s32.totalorder %s17, 3
      %p89 = por %p87, %p88
      %p90 = scmp.ne.s32.totalorder %s81, %s82
      %p91 = scmp.eq.s32.totalorder %s17, 0
      %p92 = por %p90, %p91
      %p93 = scmp.ne.s32.totalorder %s81, %s82
      %p94 = scmp.eq.s32.totalorder %s18, 3
      %p95 = por %p93, %p94
      %p97 = scmp.ne.s32.totalorder %s82, %s96
      %p98 = scmp.eq.s32.totalorder %s18, 0
      %p99 = por %p97, %p98
      %s100 = ssub.s32 %s19, %s31
      %s101 = ssub.s32 %s20, %s27
      %s102 = sor.u32 %s100, %s101
      %p103 = scmp.eq.s32.totalorder %s102, 0
      %s105 = sadd.s32 %s104, 1
      %s106 = scalar_select %p103, %s104, %s105
      %p109 = pneg %p103
      %p110 = scmp.eq.s32.totalorder %s12, 3
      %p111 = por %p109, %p110
      %p112 = scmp.ne.s32.totalorder %s104, %s107
      %p113 = scmp.eq.s32.totalorder %s12, 0
      %p114 = por %p112, %p113
      %p115 = scmp.ne.s32.totalorder %s104, %s107
      %p116 = scmp.eq.s32.totalorder %s17, 3
      %p117 = por %p115, %p116
      %p118 = scmp.ne.s32.totalorder %s107, %s108
      %p119 = scmp.eq.s32.totalorder %s17, 0
      %p120 = por %p118, %p119
      %p121 = scmp.ne.s32.totalorder %s107, %s108
      %p122 = scmp.eq.s32.totalorder %s18, 3
      %p123 = por %p121, %p122
      %p125 = scmp.ne.s32.totalorder %s108, %s124
      %p126 = scmp.eq.s32.totalorder %s18, 0
      %p127 = por %p125, %p126
      %p128 = scmp.le.s32.totalorder 1, %s12
      %p129 = scmp.lt.s32.totalorder %s12, 5
      %p130 = pnand %p128, %p129
      %p131 = pneg %p130
      // Predicated region
      $region9: #{tpu_custom_call.1} parent=5 // pred_check
        _
      $region10: #{tpu_custom_call.1} parent=5 // pred_check_branch
        %133 = sbr.rel (%p130) target = $region12
      $region11: #{tpu_custom_call.1} parent=5 // pred_region
        %s134 = ssub.s32 %s12, 1
        // Predicated region
        $region13: #{tpu_custom_call.1} parent=11 // pred_check
          %p135 = pneg %p71
        $region14: #{tpu_custom_call.1} parent=11 // pred_check_branch
          %137 = sbr.rel (%p135) target = $region16
        $region15: #{tpu_custom_call.1} parent=11 // pred_region
          _
        $region16: #{tpu_custom_call.1} parent=11 // pred_fallthru
          _
        // Predicated region
        $region17: #{tpu_custom_call.1} parent=11 // pred_check
          %p138 = pneg %p92
        $region18: #{tpu_custom_call.1} parent=11 // pred_check_branch
          %140 = sbr.rel (%p138) target = $region20
        $region19: #{tpu_custom_call.1} parent=11 // pred_region
          _
        $region20: #{tpu_custom_call.1} parent=11 // pred_fallthru
          _
      $region12: #{tpu_custom_call.1} parent=5 // pred_fallthru
        _
      %p141 = scmp.lt.s32.totalorder %s12, 4
      // Predicated region
      $region21: #{tpu_custom_call.1} parent=5 // pred_check
        %p142 = pneg %p141
      $region22: #{tpu_custom_call.1} parent=5 // pred_check_branch
        %144 = sbr.rel (%p142) target = $region24
      $region23: #{tpu_custom_call.1} parent=5 // pred_region
        // Predicated region
        $region25: #{tpu_custom_call.1} parent=23 // pred_check
          %p145 = pneg %p44
        $region26: #{tpu_custom_call.1} parent=23 // pred_check_branch
          %147 = sbr.rel (%p145) target = $region28
        $region27: #{tpu_custom_call.1} parent=23 // pred_region
          %p148 = scmp.lt.s32.totalorder %s19, 1
          %s149 = scalar_select %p148, %s19, 1
          %s150 = smul.addr %s149, 32
          %s151 = smul.addr %s150, 8
          %s152 = scalar_lea.vmem %s0, %s151
        $region28: #{tpu_custom_call.1} parent=23 // pred_fallthru
          _
      $region24: #{tpu_custom_call.1} parent=5 // pred_fallthru
        _
      %p153 = scmp.le.s32.totalorder 1, %s12
      %p154 = scmp.lt.s32.totalorder %s12, 5
      %p155 = pnand %p153, %p154
      %p156 = pneg %p155
      // Predicated region
      $region29: #{tpu_custom_call.1} parent=5 // pred_check
        _
      $region30: #{tpu_custom_call.1} parent=5 // pred_check_branch
        %158 = sbr.rel (%p155) target = $region32
      $region31: #{tpu_custom_call.1} parent=5 // pred_region
        %s159 = ssub.s32 %s12, 1
        %p160 = scmp.lt.s32.totalorder %s21, 1
        %s161 = scalar_select %p160, %s21, 1
        %s162 = smul.addr %s161, 32
        %s163 = smul.addr %s162, 8
        %s164 = scalar_lea.vmem %s0, %s163
        %p165 = pneg %p50
        %p166 = pneg %p47
        %p167 = pneg %p71
        %p168 = pneg %p68
        %p169 = pneg %p92
        %p170 = pneg %p89
        %p171 = pneg %p120
        %p172 = pneg %p117
        %s173 = sand.u32 %s107, 1
        %s174 = scalar_lea.sflag [#allocation4], %s173
        %s175 = sand.u32 %s107, 1
        %s176 = smul.addr %s175, 128
        %s177 = scalar_lea.vmem [#allocation3], %s176
        %p178 = scmp.lt.s32.totalorder %s21, 1
        %s179 = scalar_select %p178, %s21, 1
        %s180 = smul.addr %s179, 32
        %s181 = smul.addr %s180, 8
        %s182 = scalar_lea.vmem %s0, %s181
        %s183 = smul.u32 8, %s22
        %s184 = smul.u32 %s22, 8
        %vm185 = vcmask 31744
        %186 = vst.msk [vmem:[#allocation2] sm:$0xff] %vm185, 0.0
        %187 = vst.msk [vmem:[#allocation2 + $0x8] sm:$0xff] %vm185, 0.0
        %vm188 = vcmask 25600
        %189 = vst.msk [vmem:[#allocation2 + $0x10] sm:$0x3] %vm188, 0.0
        %190 = vst.msk [vmem:[#allocation2 + $0x18] sm:$0xff] %vm185, 0.0
        %191 = vst.msk [vmem:[#allocation2 + $0x20] sm:$0xff] %vm185, 0.0
        %192 = vst.msk [vmem:[#allocation2 + $0x28] sm:$0x3] %vm188, 0.0
        %193 = vst.msk [vmem:[#allocation2 + $0x30] sm:$0xff] %vm185, 0.0
        %194 = vst.msk [vmem:[#allocation2 + $0x38] sm:$0xff] %vm185, 0.0
        %195 = vst.msk [vmem:[#allocation2 + $0x40] sm:$0x3] %vm188, 0.0
        %196 = vst.msk [vmem:[#allocation2 + $0x48] sm:$0xff] %vm185, 0.0
        %197 = vst.msk [vmem:[#allocation2 + $0x50] sm:$0xff] %vm185, 0.0
        %198 = vst.msk [vmem:[#allocation2 + $0x58] sm:$0x3] %vm188, 0.0
        %199 = vst.msk [vmem:[#allocation2 + $0x60] sm:$0xff] %vm185, 0.0
        %200 = vst.msk [vmem:[#allocation2 + $0x68] sm:$0xff] %vm185, 0.0
        %201 = vst.msk [vmem:[#allocation2 + $0x70] sm:$0x3] %vm188, 0.0
        %202 = vst.msk [vmem:[#allocation2 + $0x78] sm:$0xff] %vm185, 0.0
        %203 = vst.msk [vmem:[#allocation2 + $0x80] sm:$0xff] %vm185, 0.0
        %204 = vst.msk [vmem:[#allocation2 + $0x88] sm:$0x3] %vm188, 0.0
        %205 = vst.msk [vmem:[#allocation2 + $0x90] sm:$0xff] %vm185, 0.0
        %206 = vst.msk [vmem:[#allocation2 + $0x98] sm:$0xff] %vm185, 0.0
        %207 = vst.msk [vmem:[#allocation2 + $0xa0] sm:$0x3] %vm188, 0.0
        %208 = vst.msk [vmem:[#allocation2 + $0xa8] sm:$0xff] %vm185, 0.0
        %209 = vst.msk [vmem:[#allocation2 + $0xb0] sm:$0xff] %vm185, 0.0
        %210 = vst.msk [vmem:[#allocation2 + $0xb8] sm:$0x3] %vm188, 0.0
        %211 = vst.msk [vmem:[#allocation2 + $0xc0] sm:$0xff] %vm185, 0.0
        %212 = vst.msk [vmem:[#allocation2 + $0xc8] sm:$0xff] %vm185, 0.0
        %213 = vst.msk [vmem:[#allocation2 + $0xd0] sm:$0x3] %vm188, 0.0
        %214 = vst.msk [vmem:[#allocation2 + $0xd8] sm:$0xff] %vm185, 0.0
        %215 = vst.msk [vmem:[#allocation2 + $0xe0] sm:$0xff] %vm185, 0.0
        %216 = vst.msk [vmem:[#allocation2 + $0xe8] sm:$0x3] %vm188, 0.0
        %s217 = smul.u32 %s184, 16
        %s218 = scalar_lea.vmem %s182, %s217
        %v219 = vld [vmem:[%s218] sm:$0xff]
        %v220 = vld [vmem:[%s218 + $0x8] sm:$0xff]
        %v221 = vld [vmem:[%s218 + $0x10] sm:$0xff]
        %v222 = vld [vmem:[%s218 + $0x18] sm:$0xff]
        %v223 = vld [vmem:[%s218 + $0x20] sm:$0xff]
        %v224 = vld [vmem:[%s218 + $0x28] sm:$0xff]
        %v225 = vld [vmem:[%s218 + $0x30] sm:$0xff]
        %v226 = vld [vmem:[%s218 + $0x38] sm:$0xff]
        %v227 = vld [vmem:[%s218 + $0x40] sm:$0xff]
        %v228 = vld [vmem:[%s218 + $0x48] sm:$0xff]
        %v229 = vld [vmem:[%s218 + $0x50] sm:$0xff]
        %v230 = vld [vmem:[%s218 + $0x58] sm:$0xff]
        %v231 = vld [vmem:[%s218 + $0x60] sm:$0xff]
        %v232 = vld [vmem:[%s218 + $0x68] sm:$0xff]
        %v233 = vld [vmem:[%s218 + $0x70] sm:$0xff]
        %v234 = vld [vmem:[%s218 + $0x78] sm:$0xff]
        %s235 = scalar_lea.vmem [#allocation2], 24
        %236 = vst.msk [vmem:[%s235 + $0x1] sm:$0xff] %vm185, %v219
        %237 = vst.msk [vmem:[%s235 + $0x9] sm:$0xff] %vm185, %v220
        %238 = vst.msk [vmem:[%s235 + $0x19] sm:$0xff] %vm185, %v221
        %239 = vst.msk [vmem:[%s235 + $0x21] sm:$0xff] %vm185, %v222
        %240 = vst.msk [vmem:[%s235 + $0x31] sm:$0xff] %vm185, %v223
        %241 = vst.msk [vmem:[%s235 + $0x39] sm:$0xff] %vm185, %v224
        %242 = vst.msk [vmem:[%s235 + $0x49] sm:$0xff] %vm185, %v225
        %243 = vst.msk [vmem:[%s235 + $0x51] sm:$0xff] %vm185, %v226
        %244 = vst.msk [vmem:[%s235 + $0x61] sm:$0xff] %vm185, %v227
        %245 = vst.msk [vmem:[%s235 + $0x69] sm:$0xff] %vm185, %v228
        %246 = vst.msk [vmem:[%s235 + $0x79] sm:$0xff] %vm185, %v229
        %247 = vst.msk [vmem:[%s235 + $0x81] sm:$0xff] %vm185, %v230
        %248 = vst.msk [vmem:[%s235 + $0x91] sm:$0xff] %vm185, %v231
        %249 = vst.msk [vmem:[%s235 + $0x99] sm:$0xff] %vm185, %v232
        %250 = vst.msk [vmem:[%s235 + $0xa9] sm:$0xff] %vm185, %v233
        %251 = vst.msk [vmem:[%s235 + $0xb1] sm:$0xff] %vm185, %v234
        %p252 = scmp.gt.s32.totalorder %s22, 0
        // Predicated region
        $region33: #{tpu_custom_call.1} parent=31 // pred_check
          %p253 = pneg %p252
        $region34: #{tpu_custom_call.1} parent=31 // pred_check_branch
          %255 = sbr.rel (%p253) target = $region36
        $region35: #{tpu_custom_call.1} parent=31 // pred_region
          %s256 = ssub.s32 %s184, 1
          %p257 = scmp.gt.s32.totalorder %s256, 0
          %s258 = scalar_select %p257, %s256, 0
          %s259 = smul.u32 %s258, 16
          %s260 = scalar_lea.vmem %s182, %s259
          %v261 = vld [vmem:[%s260] sm:$0xff]
          %v262 = vld [vmem:[%s260 + $0x8] sm:$0xff]
          %263 = vst.msk [vmem:[#allocation2 + $0x1] sm:$0xff] %vm185, %v261
          %264 = vst.msk [vmem:[#allocation2 + $0x9] sm:$0xff] %vm185, %v262
        $region36: #{tpu_custom_call.1} parent=31 // pred_fallthru
          _
        %p265 = scmp.lt.s32.totalorder %s22, 1
        // Predicated region
        $region37: #{tpu_custom_call.1} parent=31 // pred_check
          %p266 = pneg %p265
        $region38: #{tpu_custom_call.1} parent=31 // pred_check_branch
          %268 = sbr.rel (%p266) target = $region40
        $region39: #{tpu_custom_call.1} parent=31 // pred_region
          %s269 = sadd.s32 %s184, 8
          %p270 = scmp.lt.s32.totalorder %s269, 15
          %s271 = scalar_select %p270, %s269, 15
          %s272 = smul.u32 %s271, 16
          %s273 = scalar_lea.vmem %s182, %s272
          %v274 = vld [vmem:[%s273] sm:$0xff]
          %v275 = vld [vmem:[%s273 + $0x8] sm:$0xff]
          %s276 = scalar_lea.vmem [#allocation2], 216
          %277 = vst.msk [vmem:[%s276 + $0x1] sm:$0xff] %vm185, %v274
          %278 = vst.msk [vmem:[%s276 + $0x9] sm:$0xff] %vm185, %v275
        $region40: #{tpu_custom_call.1} parent=31 // pred_fallthru
          _
        %v279 = vld [vmem:[#allocation2] sm:$0xff]
        %v280 = vld [vmem:[#allocation2 + $0x8] sm:$0xff]
        %v281 = vld [vmem:[#allocation2 + $0x18] sm:$0xff]
        %v282 = vld [vmem:[#allocation2 + $0x20] sm:$0xff]
        %v283 = vld [vmem:[#allocation2 + $0x30] sm:$0xff]
        %v284 = vld [vmem:[#allocation2 + $0x38] sm:$0xff]
        %v285 = vld [vmem:[#allocation2 + $0x48] sm:$0xff]
        %v286 = vld [vmem:[#allocation2 + $0x50] sm:$0xff]
        %v287 = vld [vmem:[#allocation2 + $0x60] sm:$0xff]
        %v288 = vld [vmem:[#allocation2 + $0x68] sm:$0xff]
        %v289 = vld [vmem:[#allocation2 + $0x78] sm:$0xff]
        %v290 = vld [vmem:[#allocation2 + $0x80] sm:$0xff]
        %v291 = vld [vmem:[#allocation2 + $0x90] sm:$0xff]
        %v292 = vld [vmem:[#allocation2 + $0x98] sm:$0xff]
        %v293 = vld [vmem:[#allocation2 + $0xa8] sm:$0xff]
        %v294 = vld [vmem:[#allocation2 + $0xb0] sm:$0xff]
        %v295 = vld [vmem:[#allocation2 + $0x1] sm:$0xff]
        %v296 = vld [vmem:[#allocation2 + $0x9] sm:$0xff]
        %v297 = vld [vmem:[#allocation2 + $0x19] sm:$0xff]
        %v298 = vld [vmem:[#allocation2 + $0x21] sm:$0xff]
        %v299 = vld [vmem:[#allocation2 + $0x31] sm:$0xff]
        %v300 = vld [vmem:[#allocation2 + $0x39] sm:$0xff]
        %v301 = vld [vmem:[#allocation2 + $0x49] sm:$0xff]
        %v302 = vld [vmem:[#allocation2 + $0x51] sm:$0xff]
        %v303 = vld [vmem:[#allocation2 + $0x61] sm:$0xff]
        %v304 = vld [vmem:[#allocation2 + $0x69] sm:$0xff]
        %v305 = vld [vmem:[#allocation2 + $0x79] sm:$0xff]
        %v306 = vld [vmem:[#allocation2 + $0x81] sm:$0xff]
        %v307 = vld [vmem:[#allocation2 + $0x91] sm:$0xff]
        %v308 = vld [vmem:[#allocation2 + $0x99] sm:$0xff]
        %v309 = vld [vmem:[#allocation2 + $0xa9] sm:$0xff]
        %v310 = vld [vmem:[#allocation2 + $0xb1] sm:$0xff]
        %v311 = vld [vmem:[#allocation2 + $0x2] sm:$0xff]
        %v312 = vld [vmem:[#allocation2 + $0xa] sm:$0xff]
        %v313 = vld [vmem:[#allocation2 + $0x1a] sm:$0xff]
        %v314 = vld [vmem:[#allocation2 + $0x22] sm:$0xff]
        %v315 = vld [vmem:[#allocation2 + $0x32] sm:$0xff]
        %v316 = vld [vmem:[#allocation2 + $0x3a] sm:$0xff]
        %v317 = vld [vmem:[#allocation2 + $0x4a] sm:$0xff]
        %v318 = vld [vmem:[#allocation2 + $0x52] sm:$0xff]
        %v319 = vld [vmem:[#allocation2 + $0x62] sm:$0xff]
        %v320 = vld [vmem:[#allocation2 + $0x6a] sm:$0xff]
        %v321 = vld [vmem:[#allocation2 + $0x7a] sm:$0xff]
        %v322 = vld [vmem:[#allocation2 + $0x82] sm:$0xff]
        %v323 = vld [vmem:[#allocation2 + $0x92] sm:$0xff]
        %v324 = vld [vmem:[#allocation2 + $0x9a] sm:$0xff]
        %v325 = vld [vmem:[#allocation2 + $0xaa] sm:$0xff]
        %v326 = vld [vmem:[#allocation2 + $0xb2] sm:$0xff]
        %v327 = vld [vmem:[%s235] sm:$0xff]
        %v328 = vld [vmem:[%s235 + $0x8] sm:$0xff]
        %v329 = vld [vmem:[%s235 + $0x18] sm:$0xff]
        %v330 = vld [vmem:[%s235 + $0x20] sm:$0xff]
        %v331 = vld [vmem:[%s235 + $0x30] sm:$0xff]
        %v332 = vld [vmem:[%s235 + $0x38] sm:$0xff]
        %v333 = vld [vmem:[%s235 + $0x48] sm:$0xff]
        %v334 = vld [vmem:[%s235 + $0x50] sm:$0xff]
        %v335 = vld [vmem:[%s235 + $0x60] sm:$0xff]
        %v336 = vld [vmem:[%s235 + $0x68] sm:$0xff]
        %v337 = vld [vmem:[%s235 + $0x78] sm:$0xff]
        %v338 = vld [vmem:[%s235 + $0x80] sm:$0xff]
        %v339 = vld [vmem:[%s235 + $0x90] sm:$0xff]
        %v340 = vld [vmem:[%s235 + $0x98] sm:$0xff]
        %v341 = vld [vmem:[%s235 + $0xa8] sm:$0xff]
        %v342 = vld [vmem:[%s235 + $0xb0] sm:$0xff]
        %v343 = vld [vmem:[%s235 + $0x1] sm:$0xff]
        %v344 = vld [vmem:[%s235 + $0x9] sm:$0xff]
        %v345 = vld [vmem:[%s235 + $0x19] sm:$0xff]
        %v346 = vld [vmem:[%s235 + $0x21] sm:$0xff]
        %v347 = vld [vmem:[%s235 + $0x31] sm:$0xff]
        %v348 = vld [vmem:[%s235 + $0x39] sm:$0xff]
        %v349 = vld [vmem:[%s235 + $0x49] sm:$0xff]
        %v350 = vld [vmem:[%s235 + $0x51] sm:$0xff]
        %v351 = vld [vmem:[%s235 + $0x61] sm:$0xff]
        %v352 = vld [vmem:[%s235 + $0x69] sm:$0xff]
        %v353 = vld [vmem:[%s235 + $0x79] sm:$0xff]
        %v354 = vld [vmem:[%s235 + $0x81] sm:$0xff]
        %v355 = vld [vmem:[%s235 + $0x91] sm:$0xff]
        %v356 = vld [vmem:[%s235 + $0x99] sm:$0xff]
        %v357 = vld [vmem:[%s235 + $0xa9] sm:$0xff]
        %v358 = vld [vmem:[%s235 + $0xb1] sm:$0xff]
        %v359 = vld [vmem:[%s235 + $0x2] sm:$0xff]
        %v360 = vld [vmem:[%s235 + $0xa] sm:$0xff]
        %v361 = vld [vmem:[%s235 + $0x1a] sm:$0xff]
        %v362 = vld [vmem:[%s235 + $0x22] sm:$0xff]
        %v363 = vld [vmem:[%s235 + $0x32] sm:$0xff]
        %v364 = vld [vmem:[%s235 + $0x3a] sm:$0xff]
        %v365 = vld [vmem:[%s235 + $0x4a] sm:$0xff]
        %v366 = vld [vmem:[%s235 + $0x52] sm:$0xff]
        %v367 = vld [vmem:[%s235 + $0x62] sm:$0xff]
        %v368 = vld [vmem:[%s235 + $0x6a] sm:$0xff]
        %v369 = vld [vmem:[%s235 + $0x7a] sm:$0xff]
        %v370 = vld [vmem:[%s235 + $0x82] sm:$0xff]
        %v371 = vld [vmem:[%s235 + $0x92] sm:$0xff]
        %v372 = vld [vmem:[%s235 + $0x9a] sm:$0xff]
        %v373 = vld [vmem:[%s235 + $0xaa] sm:$0xff]
        %v374 = vld [vmem:[%s235 + $0xb2] sm:$0xff]
        %s375 = scalar_lea.vmem [#allocation2], 48
        %v376 = vld [vmem:[%s375] sm:$0xff]
        %v377 = vld [vmem:[%s375 + $0x8] sm:$0xff]
        %v378 = vld [vmem:[%s375 + $0x18] sm:$0xff]
        %v379 = vld [vmem:[%s375 + $0x20] sm:$0xff]
        %v380 = vld [vmem:[%s375 + $0x30] sm:$0xff]
        %v381 = vld [vmem:[%s375 + $0x38] sm:$0xff]
        %v382 = vld [vmem:[%s375 + $0x48] sm:$0xff]
        %v383 = vld [vmem:[%s375 + $0x50] sm:$0xff]
        %v384 = vld [vmem:[%s375 + $0x60] sm:$0xff]
        %v385 = vld [vmem:[%s375 + $0x68] sm:$0xff]
        %v386 = vld [vmem:[%s375 + $0x78] sm:$0xff]
        %v387 = vld [vmem:[%s375 + $0x80] sm:$0xff]
        %v388 = vld [vmem:[%s375 + $0x90] sm:$0xff]
        %v389 = vld [vmem:[%s375 + $0x98] sm:$0xff]
        %v390 = vld [vmem:[%s375 + $0xa8] sm:$0xff]
        %v391 = vld [vmem:[%s375 + $0xb0] sm:$0xff]
        %v392 = vld [vmem:[%s375 + $0x1] sm:$0xff]
        %v393 = vld [vmem:[%s375 + $0x9] sm:$0xff]
        %v394 = vld [vmem:[%s375 + $0x19] sm:$0xff]
        %v395 = vld [vmem:[%s375 + $0x21] sm:$0xff]
        %v396 = vld [vmem:[%s375 + $0x31] sm:$0xff]
        %v397 = vld [vmem:[%s375 + $0x39] sm:$0xff]
        %v398 = vld [vmem:[%s375 + $0x49] sm:$0xff]
        %v399 = vld [vmem:[%s375 + $0x51] sm:$0xff]
        %v400 = vld [vmem:[%s375 + $0x61] sm:$0xff]
        %v401 = vld [vmem:[%s375 + $0x69] sm:$0xff]
        %v402 = vld [vmem:[%s375 + $0x79] sm:$0xff]
        %v403 = vld [vmem:[%s375 + $0x81] sm:$0xff]
        %v404 = vld [vmem:[%s375 + $0x91] sm:$0xff]
        %v405 = vld [vmem:[%s375 + $0x99] sm:$0xff]
        %v406 = vld [vmem:[%s375 + $0xa9] sm:$0xff]
        %v407 = vld [vmem:[%s375 + $0xb1] sm:$0xff]
        %v408 = vld [vmem:[%s375 + $0x2] sm:$0xff]
        %v409 = vld [vmem:[%s375 + $0xa] sm:$0xff]
        %v410 = vld [vmem:[%s375 + $0x1a] sm:$0xff]
        %v411 = vld [vmem:[%s375 + $0x22] sm:$0xff]
        %v412 = vld [vmem:[%s375 + $0x32] sm:$0xff]
        %v413 = vld [vmem:[%s375 + $0x3a] sm:$0xff]
        %v414 = vld [vmem:[%s375 + $0x4a] sm:$0xff]
        %v415 = vld [vmem:[%s375 + $0x52] sm:$0xff]
        %v416 = vld [vmem:[%s375 + $0x62] sm:$0xff]
        %v417 = vld [vmem:[%s375 + $0x6a] sm:$0xff]
        %v418 = vld [vmem:[%s375 + $0x7a] sm:$0xff]
        %v419 = vld [vmem:[%s375 + $0x82] sm:$0xff]
        %v420 = vld [vmem:[%s375 + $0x92] sm:$0xff]
        %v421 = vld [vmem:[%s375 + $0x9a] sm:$0xff]
        %v422 = vld [vmem:[%s375 + $0xaa] sm:$0xff]
        %v423 = vld [vmem:[%s375 + $0xb2] sm:$0xff]
        %440 = vrot.lane.b32.xlu0 %v295, 4
        %v441 = vpop.permute.xlu0 %440
        %442 = vrot.lane.b32.xlu0 %v296, 4
        %v443 = vpop.permute.xlu0 %442
        %444 = vrot.lane.b32.xlu0 %v297, 4
        %v445 = vpop.permute.xlu0 %444
        %446 = vrot.lane.b32.xlu0 %v298, 4
        %v447 = vpop.permute.xlu0 %446
        %448 = vrot.lane.b32.xlu0 %v299, 4
        %v449 = vpop.permute.xlu0 %448
        %450 = vrot.lane.b32.xlu0 %v300, 4
        %v451 = vpop.permute.xlu0 %450
        %452 = vrot.lane.b32.xlu0 %v301, 4
        %v453 = vpop.permute.xlu0 %452
        %454 = vrot.lane.b32.xlu0 %v302, 4
        %v455 = vpop.permute.xlu0 %454
        %456 = vrot.lane.b32.xlu0 %v303, 4
        %v457 = vpop.permute.xlu0 %456
        %458 = vrot.lane.b32.xlu0 %v304, 4
        %v459 = vpop.permute.xlu0 %458
        %460 = vrot.lane.b32.xlu0 %v305, 4
        %v461 = vpop.permute.xlu0 %460
        %462 = vrot.lane.b32.xlu0 %v306, 4
        %v463 = vpop.permute.xlu0 %462
        %464 = vrot.lane.b32.xlu0 %v307, 4
        %v465 = vpop.permute.xlu0 %464
        %466 = vrot.lane.b32.xlu0 %v308, 4
        %v467 = vpop.permute.xlu0 %466
        %468 = vrot.lane.b32.xlu0 %v309, 4
        %v469 = vpop.permute.xlu0 %468
        %470 = vrot.lane.b32.xlu0 %v310, 4
        %v471 = vpop.permute.xlu0 %470
        %504 = vrot.lane.b32.xlu0 %v311, 8
        %v505 = vpop.permute.xlu0 %504
        %506 = vrot.lane.b32.xlu0 %v312, 8
        %v507 = vpop.permute.xlu0 %506
        %508 = vrot.lane.b32.xlu0 %v313, 8
        %v509 = vpop.permute.xlu0 %508
        %510 = vrot.lane.b32.xlu0 %v314, 8
        %v511 = vpop.permute.xlu0 %510
        %512 = vrot.lane.b32.xlu0 %v315, 8
        %v513 = vpop.permute.xlu0 %512
        %514 = vrot.lane.b32.xlu0 %v316, 8
        %v515 = vpop.permute.xlu0 %514
        %516 = vrot.lane.b32.xlu0 %v317, 8
        %v517 = vpop.permute.xlu0 %516
        %518 = vrot.lane.b32.xlu0 %v318, 8
        %v519 = vpop.permute.xlu0 %518
        %520 = vrot.lane.b32.xlu0 %v319, 8
        %v521 = vpop.permute.xlu0 %520
        %522 = vrot.lane.b32.xlu0 %v320, 8
        %v523 = vpop.permute.xlu0 %522
        %524 = vrot.lane.b32.xlu0 %v321, 8
        %v525 = vpop.permute.xlu0 %524
        %526 = vrot.lane.b32.xlu0 %v322, 8
        %v527 = vpop.permute.xlu0 %526
        %528 = vrot.lane.b32.xlu0 %v323, 8
        %v529 = vpop.permute.xlu0 %528
        %530 = vrot.lane.b32.xlu0 %v324, 8
        %v531 = vpop.permute.xlu0 %530
        %532 = vrot.lane.b32.xlu0 %v325, 8
        %v533 = vpop.permute.xlu0 %532
        %534 = vrot.lane.b32.xlu0 %v326, 8
        %v535 = vpop.permute.xlu0 %534
        %568 = vrot.lane.b32.xlu0 %v327, 12
        %v569 = vpop.permute.xlu0 %568
        %570 = vrot.lane.b32.xlu0 %v328, 12
        %v571 = vpop.permute.xlu0 %570
        %572 = vrot.lane.b32.xlu0 %v329, 12
        %v573 = vpop.permute.xlu0 %572
        %574 = vrot.lane.b32.xlu0 %v330, 12
        %v575 = vpop.permute.xlu0 %574
        %576 = vrot.lane.b32.xlu0 %v331, 12
        %v577 = vpop.permute.xlu0 %576
        %578 = vrot.lane.b32.xlu0 %v332, 12
        %v579 = vpop.permute.xlu0 %578
        %580 = vrot.lane.b32.xlu0 %v333, 12
        %v581 = vpop.permute.xlu0 %580
        %582 = vrot.lane.b32.xlu0 %v334, 12
        %v583 = vpop.permute.xlu0 %582
        %584 = vrot.lane.b32.xlu0 %v335, 12
        %v585 = vpop.permute.xlu0 %584
        %586 = vrot.lane.b32.xlu0 %v336, 12
        %v587 = vpop.permute.xlu0 %586
        %588 = vrot.lane.b32.xlu0 %v337, 12
        %v589 = vpop.permute.xlu0 %588
        %590 = vrot.lane.b32.xlu0 %v338, 12
        %v591 = vpop.permute.xlu0 %590
        %592 = vrot.lane.b32.xlu0 %v339, 12
        %v593 = vpop.permute.xlu0 %592
        %594 = vrot.lane.b32.xlu0 %v340, 12
        %v595 = vpop.permute.xlu0 %594
        %596 = vrot.lane.b32.xlu0 %v341, 12
        %v597 = vpop.permute.xlu0 %596
        %598 = vrot.lane.b32.xlu0 %v342, 12
        %v599 = vpop.permute.xlu0 %598
        %632 = vrot.lane.b32.xlu0 %v343, 16
        %v633 = vpop.permute.xlu0 %632
        %634 = vrot.lane.b32.xlu0 %v344, 16
        %v635 = vpop.permute.xlu0 %634
        %636 = vrot.lane.b32.xlu0 %v345, 16
        %v637 = vpop.permute.xlu0 %636
        %638 = vrot.lane.b32.xlu0 %v346, 16
        %v639 = vpop.permute.xlu0 %638
        %640 = vrot.lane.b32.xlu0 %v347, 16
        %v641 = vpop.permute.xlu0 %640
        %642 = vrot.lane.b32.xlu0 %v348, 16
        %v643 = vpop.permute.xlu0 %642
        %644 = vrot.lane.b32.xlu0 %v349, 16
        %v645 = vpop.permute.xlu0 %644
        %646 = vrot.lane.b32.xlu0 %v350, 16
        %v647 = vpop.permute.xlu0 %646
        %648 = vrot.lane.b32.xlu0 %v351, 16
        %v649 = vpop.permute.xlu0 %648
        %650 = vrot.lane.b32.xlu0 %v352, 16
        %v651 = vpop.permute.xlu0 %650
        %652 = vrot.lane.b32.xlu0 %v353, 16
        %v653 = vpop.permute.xlu0 %652
        %654 = vrot.lane.b32.xlu0 %v354, 16
        %v655 = vpop.permute.xlu0 %654
        %656 = vrot.lane.b32.xlu0 %v355, 16
        %v657 = vpop.permute.xlu0 %656
        %658 = vrot.lane.b32.xlu0 %v356, 16
        %v659 = vpop.permute.xlu0 %658
        %660 = vrot.lane.b32.xlu0 %v357, 16
        %v661 = vpop.permute.xlu0 %660
        %662 = vrot.lane.b32.xlu0 %v358, 16
        %v663 = vpop.permute.xlu0 %662
        %696 = vrot.lane.b32.xlu0 %v359, 20
        %v697 = vpop.permute.xlu0 %696
        %698 = vrot.lane.b32.xlu0 %v360, 20
        %v699 = vpop.permute.xlu0 %698
        %700 = vrot.lane.b32.xlu0 %v361, 20
        %v701 = vpop.permute.xlu0 %700
        %702 = vrot.lane.b32.xlu0 %v362, 20
        %v703 = vpop.permute.xlu0 %702
        %704 = vrot.lane.b32.xlu0 %v363, 20
        %v705 = vpop.permute.xlu0 %704
        %706 = vrot.lane.b32.xlu0 %v364, 20
        %v707 = vpop.permute.xlu0 %706
        %708 = vrot.lane.b32.xlu0 %v365, 20
        %v709 = vpop.permute.xlu0 %708
        %710 = vrot.lane.b32.xlu0 %v366, 20
        %v711 = vpop.permute.xlu0 %710
        %712 = vrot.lane.b32.xlu0 %v367, 20
        %v713 = vpop.permute.xlu0 %712
        %714 = vrot.lane.b32.xlu0 %v368, 20
        %v715 = vpop.permute.xlu0 %714
        %716 = vrot.lane.b32.xlu0 %v369, 20
        %v717 = vpop.permute.xlu0 %716
        %718 = vrot.lane.b32.xlu0 %v370, 20
        %v719 = vpop.permute.xlu0 %718
        %720 = vrot.lane.b32.xlu0 %v371, 20
        %v721 = vpop.permute.xlu0 %720
        %722 = vrot.lane.b32.xlu0 %v372, 20
        %v723 = vpop.permute.xlu0 %722
        %724 = vrot.lane.b32.xlu0 %v373, 20
        %v725 = vpop.permute.xlu0 %724
        %726 = vrot.lane.b32.xlu0 %v374, 20
        %v727 = vpop.permute.xlu0 %726
        %760 = vrot.lane.b32.xlu0 %v376, 24
        %v761 = vpop.permute.xlu0 %760
        %762 = vrot.lane.b32.xlu0 %v377, 24
        %v763 = vpop.permute.xlu0 %762
        %764 = vrot.lane.b32.xlu0 %v378, 24
        %v765 = vpop.permute.xlu0 %764
        %766 = vrot.lane.b32.xlu0 %v379, 24
        %v767 = vpop.permute.xlu0 %766
        %768 = vrot.lane.b32.xlu0 %v380, 24
        %v769 = vpop.permute.xlu0 %768
        %770 = vrot.lane.b32.xlu0 %v381, 24
        %v771 = vpop.permute.xlu0 %770
        %772 = vrot.lane.b32.xlu0 %v382, 24
        %v773 = vpop.permute.xlu0 %772
        %774 = vrot.lane.b32.xlu0 %v383, 24
        %v775 = vpop.permute.xlu0 %774
        %776 = vrot.lane.b32.xlu0 %v384, 24
        %v777 = vpop.permute.xlu0 %776
        %778 = vrot.lane.b32.xlu0 %v385, 24
        %v779 = vpop.permute.xlu0 %778
        %780 = vrot.lane.b32.xlu0 %v386, 24
        %v781 = vpop.permute.xlu0 %780
        %782 = vrot.lane.b32.xlu0 %v387, 24
        %v783 = vpop.permute.xlu0 %782
        %784 = vrot.lane.b32.xlu0 %v388, 24
        %v785 = vpop.permute.xlu0 %784
        %786 = vrot.lane.b32.xlu0 %v389, 24
        %v787 = vpop.permute.xlu0 %786
        %788 = vrot.lane.b32.xlu0 %v390, 24
        %v789 = vpop.permute.xlu0 %788
        %790 = vrot.lane.b32.xlu0 %v391, 24
        %v791 = vpop.permute.xlu0 %790
        %824 = vrot.lane.b32.xlu0 %v392, 28
        %v825 = vpop.permute.xlu0 %824
        %826 = vrot.lane.b32.xlu0 %v393, 28
        %v827 = vpop.permute.xlu0 %826
        %828 = vrot.lane.b32.xlu0 %v394, 28
        %v829 = vpop.permute.xlu0 %828
        %830 = vrot.lane.b32.xlu0 %v395, 28
        %v831 = vpop.permute.xlu0 %830
        %832 = vrot.lane.b32.xlu0 %v396, 28
        %v833 = vpop.permute.xlu0 %832
        %834 = vrot.lane.b32.xlu0 %v397, 28
        %v835 = vpop.permute.xlu0 %834
        %836 = vrot.lane.b32.xlu0 %v398, 28
        %v837 = vpop.permute.xlu0 %836
        %838 = vrot.lane.b32.xlu0 %v399, 28
        %v839 = vpop.permute.xlu0 %838
        %840 = vrot.lane.b32.xlu0 %v400, 28
        %v841 = vpop.permute.xlu0 %840
        %842 = vrot.lane.b32.xlu0 %v401, 28
        %v843 = vpop.permute.xlu0 %842
        %844 = vrot.lane.b32.xlu0 %v402, 28
        %v845 = vpop.permute.xlu0 %844
        %846 = vrot.lane.b32.xlu0 %v403, 28
        %v847 = vpop.permute.xlu0 %846
        %848 = vrot.lane.b32.xlu0 %v404, 28
        %v849 = vpop.permute.xlu0 %848
        %850 = vrot.lane.b32.xlu0 %v405, 28
        %v851 = vpop.permute.xlu0 %850
        %852 = vrot.lane.b32.xlu0 %v406, 28
        %v853 = vpop.permute.xlu0 %852
        %854 = vrot.lane.b32.xlu0 %v407, 28
        %v855 = vpop.permute.xlu0 %854
        %888 = vrot.lane.b32.xlu0 %v408, 32
        %v889 = vpop.permute.xlu0 %888
        %890 = vrot.lane.b32.xlu0 %v409, 32
        %v891 = vpop.permute.xlu0 %890
        %892 = vrot.lane.b32.xlu0 %v410, 32
        %v893 = vpop.permute.xlu0 %892
        %894 = vrot.lane.b32.xlu0 %v411, 32
        %v895 = vpop.permute.xlu0 %894
        %896 = vrot.lane.b32.xlu0 %v412, 32
        %v897 = vpop.permute.xlu0 %896
        %898 = vrot.lane.b32.xlu0 %v413, 32
        %v899 = vpop.permute.xlu0 %898
        %900 = vrot.lane.b32.xlu0 %v414, 32
        %v901 = vpop.permute.xlu0 %900
        %902 = vrot.lane.b32.xlu0 %v415, 32
        %v903 = vpop.permute.xlu0 %902
        %904 = vrot.lane.b32.xlu0 %v416, 32
        %v905 = vpop.permute.xlu0 %904
        %906 = vrot.lane.b32.xlu0 %v417, 32
        %v907 = vpop.permute.xlu0 %906
        %908 = vrot.lane.b32.xlu0 %v418, 32
        %v909 = vpop.permute.xlu0 %908
        %910 = vrot.lane.b32.xlu0 %v419, 32
        %v911 = vpop.permute.xlu0 %910
        %912 = vrot.lane.b32.xlu0 %v420, 32
        %v913 = vpop.permute.xlu0 %912
        %914 = vrot.lane.b32.xlu0 %v421, 32
        %v915 = vpop.permute.xlu0 %914
        %916 = vrot.lane.b32.xlu0 %v422, 32
        %v917 = vpop.permute.xlu0 %916
        %918 = vrot.lane.b32.xlu0 %v423, 32
        %v919 = vpop.permute.xlu0 %918
        %v936 = vsel %vm185, %v279, %v441
        %v937 = vsel %vm185, %v280, %v443
        %v938 = vsel %vm185, %v281, %v445
        %v939 = vsel %vm185, %v282, %v447
        %v940 = vsel %vm185, %v283, %v449
        %v941 = vsel %vm185, %v284, %v451
        %v942 = vsel %vm185, %v285, %v453
        %v943 = vsel %vm185, %v286, %v455
        %v944 = vsel %vm185, %v287, %v457
        %v945 = vsel %vm185, %v288, %v459
        %v946 = vsel %vm185, %v289, %v461
        %v947 = vsel %vm185, %v290, %v463
        %v948 = vsel %vm185, %v291, %v465
        %v949 = vsel %vm185, %v292, %v467
        %v950 = vsel %vm185, %v293, %v469
        %v951 = vsel %vm185, %v294, %v471
        %vm952 = vcmask 64512
        %v953 = vsel %vm952, %v936, %v505
        %v954 = vsel %vm952, %v937, %v507
        %v955 = vsel %vm952, %v938, %v509
        %v956 = vsel %vm952, %v939, %v511
        %v957 = vsel %vm952, %v940, %v513
        %v958 = vsel %vm952, %v941, %v515
        %v959 = vsel %vm952, %v942, %v517
        %v960 = vsel %vm952, %v943, %v519
        %v961 = vsel %vm952, %v944, %v521
        %v962 = vsel %vm952, %v945, %v523
        %v963 = vsel %vm952, %v946, %v525
        %v964 = vsel %vm952, %v947, %v527
        %v965 = vsel %vm952, %v948, %v529
        %v966 = vsel %vm952, %v949, %v531
        %v967 = vsel %vm952, %v950, %v533
        %v968 = vsel %vm952, %v951, %v535
        %vm969 = vcmask 97280
        %v970 = vsel %vm969, %v953, %v569
        %v971 = vsel %vm969, %v954, %v571
        %v972 = vsel %vm969, %v955, %v573
        %v973 = vsel %vm969, %v956, %v575
        %v974 = vsel %vm969, %v957, %v577
        %v975 = vsel %vm969, %v958, %v579
        %v976 = vsel %vm969, %v959, %v581
        %v977 = vsel %vm969, %v960, %v583
        %v978 = vsel %vm969, %v961, %v585
        %v979 = vsel %vm969, %v962, %v587
        %v980 = vsel %vm969, %v963, %v589
        %v981 = vsel %vm969, %v964, %v591
        %v982 = vsel %vm969, %v965, %v593
        %v983 = vsel %vm969, %v966, %v595
        %v984 = vsel %vm969, %v967, %v597
        %v985 = vsel %vm969, %v968, %v599
        %vm986 = vcmask 130048
        %v987 = vsel %vm986, %v970, %v633
        %v988 = vsel %vm986, %v971, %v635
        %v989 = vsel %vm986, %v972, %v637
        %v990 = vsel %vm986, %v973, %v639
        %v991 = vsel %vm986, %v974, %v641
        %v992 = vsel %vm986, %v975, %v643
        %v993 = vsel %vm986, %v976, %v645
        %v994 = vsel %vm986, %v977, %v647
        %v995 = vsel %vm986, %v978, %v649
        %v996 = vsel %vm986, %v979, %v651
        %v997 = vsel %vm986, %v980, %v653
        %v998 = vsel %vm986, %v981, %v655
        %v999 = vsel %vm986, %v982, %v657
        %v1000 = vsel %vm986, %v983, %v659
        %v1001 = vsel %vm986, %v984, %v661
        %v1002 = vsel %vm986, %v985, %v663
        %vm1003 = vcmask 162816
        %v1004 = vsel %vm1003, %v987, %v697
        %v1005 = vsel %vm1003, %v988, %v699
        %v1006 = vsel %vm1003, %v989, %v701
        %v1007 = vsel %vm1003, %v990, %v703
        %v1008 = vsel %vm1003, %v991, %v705
        %v1009 = vsel %vm1003, %v992, %v707
        %v1010 = vsel %vm1003, %v993, %v709
        %v1011 = vsel %vm1003, %v994, %v711
        %v1012 = vsel %vm1003, %v995, %v713
        %v1013 = vsel %vm1003, %v996, %v715
        %v1014 = vsel %vm1003, %v997, %v717
        %v1015 = vsel %vm1003, %v998, %v719
        %v1016 = vsel %vm1003, %v999, %v721
        %v1017 = vsel %vm1003, %v1000, %v723
        %v1018 = vsel %vm1003, %v1001, %v725
        %v1019 = vsel %vm1003, %v1002, %v727
        %vm1020 = vcmask 195584
        %v1021 = vsel %vm1020, %v1004, %v761
        %v1022 = vsel %vm1020, %v1005, %v763
        %v1023 = vsel %vm1020, %v1006, %v765
        %v1024 = vsel %vm1020, %v1007, %v767
        %v1025 = vsel %vm1020, %v1008, %v769
        %v1026 = vsel %vm1020, %v1009, %v771
        %v1027 = vsel %vm1020, %v1010, %v773
        %v1028 = vsel %vm1020, %v1011, %v775
        %v1029 = vsel %vm1020, %v1012, %v777
        %v1030 = vsel %vm1020, %v1013, %v779
        %v1031 = vsel %vm1020, %v1014, %v781
        %v1032 = vsel %vm1020, %v1015, %v783
        %v1033 = vsel %vm1020, %v1016, %v785
        %v1034 = vsel %vm1020, %v1017, %v787
        %v1035 = vsel %vm1020, %v1018, %v789
        %v1036 = vsel %vm1020, %v1019, %v791
        %vm1037 = vcmask 228352
        %v1038 = vsel %vm1037, %v1021, %v825
        %v1039 = vsel %vm1037, %v1022, %v827
        %v1040 = vsel %vm1037, %v1023, %v829
        %v1041 = vsel %vm1037, %v1024, %v831
        %v1042 = vsel %vm1037, %v1025, %v833
        %v1043 = vsel %vm1037, %v1026, %v835
        %v1044 = vsel %vm1037, %v1027, %v837
        %v1045 = vsel %vm1037, %v1028, %v839
        %v1046 = vsel %vm1037, %v1029, %v841
        %v1047 = vsel %vm1037, %v1030, %v843
        %v1048 = vsel %vm1037, %v1031, %v845
        %v1049 = vsel %vm1037, %v1032, %v847
        %v1050 = vsel %vm1037, %v1033, %v849
        %v1051 = vsel %vm1037, %v1034, %v851
        %v1052 = vsel %vm1037, %v1035, %v853
        %v1053 = vsel %vm1037, %v1036, %v855
        %vm1054 = vcmask 261120
        %v1055 = vsel %vm1054, %v1038, %v889
        %v1056 = vsel %vm1054, %v1039, %v891
        %v1057 = vsel %vm1054, %v1040, %v893
        %v1058 = vsel %vm1054, %v1041, %v895
        %v1059 = vsel %vm1054, %v1042, %v897
        %v1060 = vsel %vm1054, %v1043, %v899
        %v1061 = vsel %vm1054, %v1044, %v901
        %v1062 = vsel %vm1054, %v1045, %v903
        %v1063 = vsel %vm1054, %v1046, %v905
        %v1064 = vsel %vm1054, %v1047, %v907
        %v1065 = vsel %vm1054, %v1048, %v909
        %v1066 = vsel %vm1054, %v1049, %v911
        %v1067 = vsel %vm1054, %v1050, %v913
        %v1068 = vsel %vm1054, %v1051, %v915
        %v1069 = vsel %vm1054, %v1052, %v917
        %v1070 = vsel %vm1054, %v1053, %v919
        %v1071 = vld [vmem:[%s1] sm:$0xff]
        %v1072 = vld [vmem:[%s1 + $0x8] sm:$0xff]
        %v1073 = vld [vmem:[%s1 + $0x10] sm:$0xff]
        %v1074 = vld [vmem:[%s1 + $0x18] sm:$0xff]
        %v1075 = vld [vmem:[%s1 + $0x20] sm:$0xf]
        %v1076 = vld [vmem:[%s2] sm:$0x1]
        %v1078 = vlaneseq
        %v1079 = vshrl.u32 %v1078, 7
        %v1080 = vsub.s32 0, %v1079
        %v1081 = vrot.slane %v1076, %v1080
        %vm1083 = vcmask 293888
        %v1085 = vsel %vm1083, %v1055, 0
        %v1088 = vsel %vm1083, %v1056, 0
        %v1091 = vsel %vm1083, %v1057, 0
        %v1094 = vsel %vm1083, %v1058, 0
        %v1097 = vsel %vm1083, %v1059, 0
        %v1100 = vsel %vm1083, %v1060, 0
        %v1103 = vsel %vm1083, %v1061, 0
        %v1106 = vsel %vm1083, %v1062, 0
        %v1109 = vsel %vm1083, %v1063, 0
        %v1112 = vsel %vm1083, %v1064, 0
        %v1115 = vsel %vm1083, %v1065, 0
        %v1118 = vsel %vm1083, %v1066, 0
        %v1121 = vsel %vm1083, %v1067, 0
        %v1124 = vsel %vm1083, %v1068, 0
        %v1127 = vsel %vm1083, %v1069, 0
        %v1130 = vsel %vm1083, %v1070, 0
        %vm1132 = vcmask 1043456
        %v1134 = vsel %vm1132, %v1075, 0
        %1136 = vmatprep.subr.mxu0 0.0
        %1137 = vmatpush1.msra.mxu0 0.0
        %1138 = vmatprep.subr.mxu0 0.0
        %1139 = vmatpush1.msra.mxu0 0.0
        %1140 = vmatprep.subr.mxu0 0.0
        %1141 = vmatpush1.msra.mxu0 0.0
        %1142 = vmatprep.subr.mxu0 0.0
        %1143 = vmatpush1.msra.mxu0 0.0
        %1144 = vmatprep.subr.mxu0 0.0
        %1145 = vmatpush1.msra.mxu0 0.0
        %1146 = vmatprep.subr.mxu0 0.0
        %1147 = vmatpush1.msra.mxu0 0.0
        %1148 = vmatprep.subr.mxu0 0.0
        %1149 = vmatpush1.msra.mxu0 0.0
        %1150 = vmatprep.subr.mxu0 0.0
        %1151 = vmatpush1.msra.mxu0 0.0
        %1152 = vmatprep.subr.mxu0 0.0
        %1153 = vmatpush1.msra.mxu0 0.0
        %1154 = vmatprep.subr.mxu0 0.0
        %1155 = vmatpush1.msra.mxu0 0.0
        %1156 = vmatprep.subr.mxu0 0.0
        %1157 = vmatpush1.msra.mxu0 0.0
        %1158 = vmatprep.subr.mxu0 0.0
        %1159 = vmatpush1.msra.mxu0 %v1134
        %1160 = vmatprep.subr.mxu0 0.0
        %1161 = vmatpush1.msra.mxu0 %v1074
        %1162 = vmatprep.subr.mxu0 0.0
        %1163 = vmatpush1.msra.mxu0 %v1073
        %1164 = vmatprep.subr.mxu0 0.0
        %1165 = vmatpush1.msra.mxu0 %v1072
        %1166 = vmatprep.subr.mxu0 0.0
        %1167 = vmatpush1.msra.mxu0 %v1071
        %1168 = vmatprep.subr.mxu0 0.0
        %1169 = vmatpush2.msra.mxu0 0.0
        %1170 = vmatprep.subr.mxu0 0.0
        %1171 = vmatpush2.msra.mxu0 0.0
        %1172 = vmatprep.subr.mxu0 0.0
        %1173 = vmatpush2.msra.mxu0 0.0
        %1174 = vmatprep.subr.mxu0 0.0
        %1175 = vmatpush2.msra.mxu0 0.0
        %1176 = vmatprep.subr.mxu0 0.0
        %1177 = vmatpush2.msra.mxu0 0.0
        %1178 = vmatprep.subr.mxu0 0.0
        %1179 = vmatpush2.msra.mxu0 0.0
        %1180 = vmatprep.subr.mxu0 0.0
        %1181 = vmatpush2.msra.mxu0 0.0
        %1182 = vmatprep.subr.mxu0 0.0
        %1183 = vmatpush2.msra.mxu0 0.0
        %1184 = vmatprep.subr.mxu0 0.0
        %1185 = vmatpush2.msra.mxu0 0.0
        %1186 = vmatprep.subr.mxu0 0.0
        %1187 = vmatpush2.msra.mxu0 0.0
        %1188 = vmatprep.subr.mxu0 0.0
        %1189 = vmatpush2.msra.mxu0 0.0
        %1190 = vmatprep.subr.mxu0 0.0
        %1191 = vmatpush2.msra.mxu0 0.0
        %1192 = vmatprep.subr.mxu0 0.0
        %1193 = vmatpush2.msra.mxu0 0.0
        %1194 = vmatprep.subr.mxu0 0.0
        %1195 = vmatpush2.msra.mxu0 0.0
        %1196 = vmatprep.subr.mxu0 0.0
        %1197 = vmatpush2.msra.mxu0 0.0
        %1198 = vmatprep.subr.mxu0 0.0
        %1199 = vmatpush2.msra.mxu0 0.0
        %1200 = vmatprep.mubr.f32.mxu0 0.0
        %1201 = vmatmul.mubr.f32.gmra.mxu0 %v1085
        %v1202 = vpop.f32.mrf.mxu0
        %v1203 = vadd.f32 %v1081, %v1202
        %v1204 = vpop.f32.mrf.mxu0
        %1205 = vmatprep.mubr.f32.mxu0 0.0
        %1206 = vmatmul.mubr.f32.gmra.mxu0 %v1088
        %v1207 = vpop.f32.mrf.mxu0
        %v1208 = vadd.f32 %v1081, %v1207
        %v1209 = vpop.f32.mrf.mxu0
        %1210 = vmatprep.mubr.f32.mxu0 0.0
        %1211 = vmatmul.mubr.f32.gmra.mxu0 %v1091
        %v1212 = vpop.f32.mrf.mxu0
        %v1213 = vadd.f32 %v1081, %v1212
        %v1214 = vpop.f32.mrf.mxu0
        %1215 = vmatprep.mubr.f32.mxu0 0.0
        %1216 = vmatmul.mubr.f32.gmra.mxu0 %v1094
        %v1217 = vpop.f32.mrf.mxu0
        %v1218 = vadd.f32 %v1081, %v1217
        %v1219 = vpop.f32.mrf.mxu0
        %1220 = vmatprep.mubr.f32.mxu0 0.0
        %1221 = vmatmul.mubr.f32.gmra.mxu0 %v1097
        %v1222 = vpop.f32.mrf.mxu0
        %v1223 = vadd.f32 %v1081, %v1222
        %v1224 = vpop.f32.mrf.mxu0
        %1225 = vmatprep.mubr.f32.mxu0 0.0
        %1226 = vmatmul.mubr.f32.gmra.mxu0 %v1100
        %v1227 = vpop.f32.mrf.mxu0
        %v1228 = vadd.f32 %v1081, %v1227
        %v1229 = vpop.f32.mrf.mxu0
        %1230 = vmatprep.mubr.f32.mxu0 0.0
        %1231 = vmatmul.mubr.f32.gmra.mxu0 %v1103
        %v1232 = vpop.f32.mrf.mxu0
        %v1233 = vadd.f32 %v1081, %v1232
        %v1234 = vpop.f32.mrf.mxu0
        %1235 = vmatprep.mubr.f32.mxu0 0.0
        %1236 = vmatmul.mubr.f32.gmra.mxu0 %v1106
        %v1237 = vpop.f32.mrf.mxu0
        %v1238 = vadd.f32 %v1081, %v1237
        %v1239 = vpop.f32.mrf.mxu0
        %1240 = vmatprep.mubr.f32.mxu0 0.0
        %1241 = vmatmul.mubr.f32.gmra.mxu0 %v1109
        %v1242 = vpop.f32.mrf.mxu0
        %v1243 = vadd.f32 %v1081, %v1242
        %v1244 = vpop.f32.mrf.mxu0
        %1245 = vmatprep.mubr.f32.mxu0 0.0
        %1246 = vmatmul.mubr.f32.gmra.mxu0 %v1112
        %v1247 = vpop.f32.mrf.mxu0
        %v1248 = vadd.f32 %v1081, %v1247
        %v1249 = vpop.f32.mrf.mxu0
        %1250 = vmatprep.mubr.f32.mxu0 0.0
        %1251 = vmatmul.mubr.f32.gmra.mxu0 %v1115
        %v1252 = vpop.f32.mrf.mxu0
        %v1253 = vadd.f32 %v1081, %v1252
        %v1254 = vpop.f32.mrf.mxu0
        %1255 = vmatprep.mubr.f32.mxu0 0.0
        %1256 = vmatmul.mubr.f32.gmra.mxu0 %v1118
        %v1257 = vpop.f32.mrf.mxu0
        %v1258 = vadd.f32 %v1081, %v1257
        %v1259 = vpop.f32.mrf.mxu0
        %1260 = vmatprep.mubr.f32.mxu0 0.0
        %1261 = vmatmul.mubr.f32.gmra.mxu0 %v1121
        %v1262 = vpop.f32.mrf.mxu0
        %v1263 = vadd.f32 %v1081, %v1262
        %v1264 = vpop.f32.mrf.mxu0
        %1265 = vmatprep.mubr.f32.mxu0 0.0
        %1266 = vmatmul.mubr.f32.gmra.mxu0 %v1124
        %v1267 = vpop.f32.mrf.mxu0
        %v1268 = vadd.f32 %v1081, %v1267
        %v1269 = vpop.f32.mrf.mxu0
        %1270 = vmatprep.mubr.f32.mxu0 0.0
        %1271 = vmatmul.mubr.f32.gmra.mxu0 %v1127
        %v1272 = vpop.f32.mrf.mxu0
        %v1273 = vadd.f32 %v1081, %v1272
        %v1274 = vpop.f32.mrf.mxu0
        %1275 = vmatprep.mubr.f32.mxu0 0.0
        %1276 = vmatmul.mubr.f32.gmra.mxu0 %v1130
        %v1277 = vpop.f32.mrf.mxu0
        %v1278 = vadd.f32 %v1081, %v1277
        %v1279 = vpop.f32.mrf.mxu0
        %1280 = vdwg.mxu0
        %v1281 = vlaneseq
        %v1282 = vand.u32 %v1281, 127
        %vm1283 = vcmp.lt.s32.totalorder %v1282, 16
        %vm1284 = vcmp.lt.f32.partialorder %v1203, 0.0
        %vm1285 = vcmp.lt.f32.partialorder %v1208, 0.0
        %vm1286 = vcmp.lt.f32.partialorder %v1213, 0.0
        %vm1287 = vcmp.lt.f32.partialorder %v1218, 0.0
        %vm1288 = vcmp.lt.f32.partialorder %v1223, 0.0
        %vm1289 = vcmp.lt.f32.partialorder %v1228, 0.0
        %vm1290 = vcmp.lt.f32.partialorder %v1233, 0.0
        %vm1291 = vcmp.lt.f32.partialorder %v1238, 0.0
        %vm1292 = vcmp.lt.f32.partialorder %v1243, 0.0
        %vm1293 = vcmp.lt.f32.partialorder %v1248, 0.0
        %vm1294 = vcmp.lt.f32.partialorder %v1253, 0.0
        %vm1295 = vcmp.lt.f32.partialorder %v1258, 0.0
        %vm1296 = vcmp.lt.f32.partialorder %v1263, 0.0
        %vm1297 = vcmp.lt.f32.partialorder %v1268, 0.0
        %vm1298 = vcmp.lt.f32.partialorder %v1273, 0.0
        %vm1299 = vcmp.lt.f32.partialorder %v1278, 0.0
        %vm1300 = vmand %vm1283, %vm1284
        %vm1301 = vmand %vm1283, %vm1285
        %vm1302 = vmand %vm1283, %vm1286
        %vm1303 = vmand %vm1283, %vm1287
        %vm1304 = vmand %vm1283, %vm1288
        %vm1305 = vmand %vm1283, %vm1289
        %vm1306 = vmand %vm1283, %vm1290
        %vm1307 = vmand %vm1283, %vm1291
        %vm1308 = vmand %vm1283, %vm1292
        %vm1309 = vmand %vm1283, %vm1293
        %vm1310 = vmand %vm1283, %vm1294
        %vm1311 = vmand %vm1283, %vm1295
        %vm1312 = vmand %vm1283, %vm1296
        %vm1313 = vmand %vm1283, %vm1297
        %vm1314 = vmand %vm1283, %vm1298
        %vm1315 = vmand %vm1283, %vm1299
        %v1316 = vmul.f32 %v1203, 0.01
        %v1317 = vmul.f32 %v1208, 0.01
        %v1318 = vmul.f32 %v1213, 0.01
        %v1319 = vmul.f32 %v1218, 0.01
        %v1320 = vmul.f32 %v1223, 0.01
        %v1321 = vmul.f32 %v1228, 0.01
        %v1322 = vmul.f32 %v1233, 0.01
        %v1323 = vmul.f32 %v1238, 0.01
        %v1324 = vmul.f32 %v1243, 0.01
        %v1325 = vmul.f32 %v1248, 0.01
        %v1326 = vmul.f32 %v1253, 0.01
        %v1327 = vmul.f32 %v1258, 0.01
        %v1328 = vmul.f32 %v1263, 0.01
        %v1329 = vmul.f32 %v1268, 0.01
        %v1330 = vmul.f32 %v1273, 0.01
        %v1331 = vmul.f32 %v1278, 0.01
        %v1332 = vsel %vm1300, %v1316, %v1203
        %v1333 = vsel %vm1301, %v1317, %v1208
        %v1334 = vsel %vm1302, %v1318, %v1213
        %v1335 = vsel %vm1303, %v1319, %v1218
        %v1336 = vsel %vm1304, %v1320, %v1223
        %v1337 = vsel %vm1305, %v1321, %v1228
        %v1338 = vsel %vm1306, %v1322, %v1233
        %v1339 = vsel %vm1307, %v1323, %v1238
        %v1340 = vsel %vm1308, %v1324, %v1243
        %v1341 = vsel %vm1309, %v1325, %v1248
        %v1342 = vsel %vm1310, %v1326, %v1253
        %v1343 = vsel %vm1311, %v1327, %v1258
        %v1344 = vsel %vm1312, %v1328, %v1263
        %v1345 = vsel %vm1313, %v1329, %v1268
        %v1346 = vsel %vm1314, %v1330, %v1273
        %v1347 = vsel %vm1315, %v1331, %v1278
        %1348 = vst.msk [vmem:[%s177] sm:$0xff] %vm1054, %v1332
        %1349 = vst.msk [vmem:[%s177 + $0x8] sm:$0xff] %vm1054, %v1333
        %1350 = vst.msk [vmem:[%s177 + $0x10] sm:$0xff] %vm1054, %v1334
        %1351 = vst.msk [vmem:[%s177 + $0x18] sm:$0xff] %vm1054, %v1335
        %1352 = vst.msk [vmem:[%s177 + $0x20] sm:$0xff] %vm1054, %v1336
        %1353 = vst.msk [vmem:[%s177 + $0x28] sm:$0xff] %vm1054, %v1337
        %1354 = vst.msk [vmem:[%s177 + $0x30] sm:$0xff] %vm1054, %v1338
        %1355 = vst.msk [vmem:[%s177 + $0x38] sm:$0xff] %vm1054, %v1339
        %1356 = vst.msk [vmem:[%s177 + $0x40] sm:$0xff] %vm1054, %v1340
        %1357 = vst.msk [vmem:[%s177 + $0x48] sm:$0xff] %vm1054, %v1341
        %1358 = vst.msk [vmem:[%s177 + $0x50] sm:$0xff] %vm1054, %v1342
        %1359 = vst.msk [vmem:[%s177 + $0x58] sm:$0xff] %vm1054, %v1343
        %1360 = vst.msk [vmem:[%s177 + $0x60] sm:$0xff] %vm1054, %v1344
        %1361 = vst.msk [vmem:[%s177 + $0x68] sm:$0xff] %vm1054, %v1345
        %1362 = vst.msk [vmem:[%s177 + $0x70] sm:$0xff] %vm1054, %v1346
        %1363 = vst.msk [vmem:[%s177 + $0x78] sm:$0xff] %vm1054, %v1347
        %s1364 = sand.u32 %s107, 1
        %s1365 = scalar_lea.sflag [#allocation4], %s1364
        %s1366 = sand.u32 %s107, 1
        %s1367 = smul.addr %s1366, 128
        %s1368 = scalar_lea.vmem [#allocation3], %s1367
        // Predicated region
        $region41: #{tpu_custom_call.1} parent=31 // pred_check
          %p1369 = pneg %p117
        $region42: #{tpu_custom_call.1} parent=31 // pred_check_branch
          %1371 = sbr.rel (%p1369) target = $region44
        $region43: #{tpu_custom_call.1} parent=31 // pred_region
          %s1372 = smul.u32 8, %s22
          %s1374 = ssub.s32 2048, 2048
          %1375 = vsyncadd %s1365, %s1374
          %s1376 = smul.addr %s1372, 2
          %s1377 = smul.addr %s21, 32
          %s1378 = sadd.s32 %s1376, %s1377
          %s1379 = smul.addr %s1378, 128
          %s1380 = scalar_lea.hbm %s3, %s1379
          %s1381 = sshll.u32 %s1368, 4
          %s1382 = int_to_ptr.vmem [resolvable:$true] %s1381
          %1387 = dma.vmem_to_hbm [thread:$0]  %s1382, 2048, %s1380, %s1365, 128, 128, 8
        $region44: #{tpu_custom_call.1} parent=31 // pred_fallthru
          _
      $region32: #{tpu_custom_call.1} parent=5 // pred_fallthru
        _
      %p1388 = scmp.le.s32.totalorder 2, %s12
      // Predicated region
      $region45: #{tpu_custom_call.1} parent=5 // pred_check
        %p1389 = pneg %p1388
      $region46: #{tpu_custom_call.1} parent=5 // pred_check_branch
        %1391 = sbr.rel (%p1389) target = $region48
      $region47: #{tpu_custom_call.1} parent=5 // pred_region
        %s1392 = ssub.s32 %s12, 2
        // Predicated region
        $region49: #{tpu_custom_call.1} parent=47 // pred_check
          %p1393 = pneg %p123
        $region50: #{tpu_custom_call.1} parent=47 // pred_check_branch
          %1395 = sbr.rel (%p1393) target = $region52
        $region51: #{tpu_custom_call.1} parent=47 // pred_region
          %s1396 = sand.u32 %s108, 1
          %s1397 = scalar_lea.sflag [#allocation4], %s1396
          %s1398 = sand.u32 %s108, 1
          %s1399 = smul.addr %s1398, 128
          %s1400 = scalar_lea.vmem [#allocation3], %s1399
          %1401 = dma.done %s1397, 2048
        $region52: #{tpu_custom_call.1} parent=47 // pred_fallthru
          _
      $region48: #{tpu_custom_call.1} parent=5 // pred_fallthru
        _
    $region6: #{tpu_custom_call.1} parent=1 // loop_footer
      %s16 = sadd.s32 1, %s12
    $region7: #{tpu_custom_call.1} parent=1 // loop_footer_branch
      %11 = sbr.rel target = $region3
    $region8: #{tpu_custom_call.1} parent=1 // loop_exit
      _
    %1402 = vsyncpa [#allocation4], 1
    %s1403 = scalar_lea.sflag [#allocation4], 1
    %1404 = vsyncpa %s1403, 1

</llo_original>
